<compile_context>
chip_gen: v7x
topology: tpu7x:2x2x1
jax: 0.10.0
libtpu: 0.0.40
codegen_flags: <defaults>
</compile_context>

<pallas_src>
import functools

import jax
import jax.numpy as jnp
from jax.experimental import pallas as pl
from jax.experimental.pallas import tpu as pltpu


def _round_up(x, m):
    return (x + m - 1) // m * m


def _vae_rc_kernel(
    xe_ref,                    # [TB, D_al + L_pad] : x (zero-padded) || eps
    we_ref, be_ref,            # [D_al, hidden] bf16 , [1, hidden] f32
    wml_ref, bml_ref,          # [hidden, 2*L_pad] bf16 : Wmu(pad) || Wlv(pad)
    wzr_ref, bzr_ref,          # [latent, hidden+reservoir] bf16 = Wd1 || Win
    wdr_ref, bdr_ref,          # [hidden+res, D_al+P_pad] bf16 block-diag Wd2/Wout
    enc_ref, dec_ref, slab_ref,
    *, D, D_al, latent, latent_pad, hidden, reservoir, n_cls, slab_w,
):
    f32 = jnp.float32
    bf16 = jnp.bfloat16

    xp = xe_ref[:, :D_al]                         # x, zero-padded columns
    eps = xe_ref[:, D_al:D_al + latent]

    # --- encoder: h = relu(x @ We + be) --------------------------------------
    h = jnp.dot(xp.astype(bf16), we_ref[...], preferred_element_type=f32)
    h = jnp.maximum(h + be_ref[...], 0.0)
    enc_ref[...] = h

    # --- fused latent projection: [mu | pad | log_var | pad] ------------------
    ml = jnp.dot(h.astype(bf16), wml_ref[...], preferred_element_type=f32)
    ml = ml + bml_ref[...]
    mu = ml[:, :latent]                           # lane-aligned (offset 0)
    log_var = ml[:, latent_pad:latent_pad + latent]   # lane-aligned (offset 128k)

    # --- reparameterization ----------------------------------------------------
    z = mu + eps * jnp.exp(0.5 * log_var)

    # --- fused decoder-hidden + reservoir: [dh | r_pre] = z @ (Wd1||Win) + b ---
    zr = jnp.dot(z.astype(bf16), wzr_ref[...], preferred_element_type=f32)
    zr = zr + bzr_ref[...]
    dh = jnp.maximum(zr[:, :hidden], 0.0)
    r = jnp.tanh(zr[:, hidden:hidden + reservoir])
    dr = jnp.concatenate([dh, r], axis=-1)        # XLU; keeps the next dot fused

    # --- block-diag fused decoder output + readout ----------------------------
    # [dec_logits | pred] = [dh | r] @ [[Wd2, 0], [0, Wout]] + [bd2 | bout]
    tail = jnp.dot(dr.astype(bf16), wdr_ref[...], preferred_element_type=f32)
    tail = tail + bdr_ref[...]
    dec_ref[...] = jax.nn.sigmoid(tail[:, :D])
    pred = tail[:, D_al:D_al + n_cls]

    # --- pack small outputs: ONE in-register concat, ONE unmasked store -------
    pad = slab_w - (3 * latent + n_cls)
    pieces = [mu, log_var, z, pred]
    if pad > 0:
        pieces.append(jnp.zeros((mu.shape[0], pad), dtype=f32))
    slab_ref[...] = jnp.concatenate(pieces, axis=-1)


def method_vae_rc_forward(x_nchw, eps, params, *, block_batch=None):
    """Fused VAE+RC forward. x_nchw: [B, C, H, W] f32, eps: [B, latent] f32."""
    B, C, H, W = x_nchw.shape
    D = C * H * W
    x = x_nchw.reshape(B, D).astype(jnp.float32)   # matches torch .view(B, -1)

    (we, be, wmu, bmu, wlv, blv, wd1, bd1, wd2, bd2, win, wout, bout) = params
    hidden = we.shape[1]
    latent = wmu.shape[1]
    reservoir = win.shape[1]
    n_cls = wout.shape[1]

    f32 = jnp.float32
    bf16 = jnp.bfloat16

    D_al = _round_up(D, 128)
    latent_pad = _round_up(latent, 128)
    n_cls_pad = _round_up(n_cls, 128)

    # Encoder weight, rows zero-padded D -> D_al (x pad columns are zero too).
    we_p = jnp.zeros((D_al, hidden), f32).at[:D].set(we).astype(bf16)

    # Fused latent projection; Wlv starts at a 128-lane boundary.
    wml = jnp.zeros((hidden, 2 * latent_pad), f32)
    wml = wml.at[:, :latent].set(wmu).at[:, latent_pad:latent_pad + latent].set(wlv)
    bml = jnp.zeros((1, 2 * latent_pad), f32)
    bml = bml.at[:, :latent].set(bmu).at[:, latent_pad:latent_pad + latent].set(blv)
    wml_b = wml.astype(bf16)

    # Fused decoder-hidden + reservoir input weights.
    wzr_b = jnp.concatenate([wd1, win], axis=1).astype(bf16)
    bzr = jnp.concatenate([bd1, jnp.zeros((1, reservoir), f32)], axis=1)

    # Block-diagonal decoder-output + readout weights (modest D -> cheap zeros).
    KT = hidden + reservoir
    NT = D_al + n_cls_pad
    wdr = jnp.zeros((KT, NT), f32)
    wdr = wdr.at[:hidden, :D].set(wd2).at[hidden:, D_al:D_al + n_cls].set(wout)
    bdr = jnp.zeros((1, NT), f32)
    bdr = bdr.at[:, :D].set(bd2).at[:, D_al:D_al + n_cls].set(bout)
    wdr_b = wdr.astype(bf16)

    # Batch tile: one grid step for small B; 128/256-row tiles for bigger B so
    # the MXU M dim is filled and v7x's two TensorCores both get grid steps.
    if block_batch is None:
        if B >= 512:
            TB = 256
        elif B >= 128:
            TB = 128
        else:
            TB = _round_up(B, 8)
    else:
        TB = block_batch
    B_pad = _round_up(B, TB)

    # Fold eps into the x slab -> a single batch-tiled input DMA per step.
    xe = jnp.zeros((B_pad, D_al + latent_pad), f32)
    xe = xe.at[:B, :D].set(x).at[:B, D_al:D_al + latent].set(eps)

    slab_w = _round_up(3 * latent + n_cls, 128)    # lane-dense packed outputs

    grid = (B_pad // TB,)
    row = lambda i: (i, 0)     # batch-tiled arrays
    const = lambda i: (0, 0)   # VMEM-resident weights / biases

    def wspec(a):
        # Constant block index -> single-buffer (no wasted second VMEM copy).
        return pl.BlockSpec(a.shape, const, pipeline_mode=pl.Buffered(1))

    in_specs = [
        pl.BlockSpec((TB, D_al + latent_pad), row),   # xe = x || eps
        wspec(we_p), wspec(be),
        wspec(wml_b), wspec(bml),
        wspec(wzr_b), wspec(bzr),
        wspec(wdr_b), wspec(bdr),
    ]
    out_specs = (
        pl.BlockSpec((TB, hidden), row),        # encoded
        pl.BlockSpec((TB, D), row),             # decoded (flat)
        pl.BlockSpec((TB, slab_w), row),        # [mu | log_var | z | pred | pad]
    )
    out_shapes = (
        jax.ShapeDtypeStruct((B_pad, hidden), f32),
        jax.ShapeDtypeStruct((B_pad, D), f32),
        jax.ShapeDtypeStruct((B_pad, slab_w), f32),
    )

    # Cost estimate for the XLA scheduler.
    flops = 2 * B_pad * (D_al * hidden + hidden * 2 * latent_pad
                         + latent * KT + KT * NT)
    weight_arrays = (we_p, be, wml_b, bml, wzr_b, bzr, wdr_b, bdr)
    bytes_weights = sum(int(a.size) * a.dtype.itemsize for a in weight_arrays)
    tile_bytes = 4 * TB * ((D_al + latent_pad) + hidden + D + slab_w)
    cost = pl.CostEstimate(
        flops=flops,
        transcendentals=B_pad * (D + latent + reservoir),
        bytes_accessed=bytes_weights + (B_pad // TB) * tile_bytes,
    )

    # VMEM: weights x1 (single-buffered), moving tiles x2, + compiler headroom.
    # Capped at 48 MiB so Mosaic keeps scratch room on v7x's 64 MiB VMEM.
    vmem_needed = bytes_weights + 2 * tile_bytes + (4 << 20)
    vmem_limit = max(8 << 20, min(48 * 1024 * 1024, int(vmem_needed)))

    kernel = functools.partial(
        _vae_rc_kernel,
        D=D, D_al=D_al, latent=latent, latent_pad=latent_pad,
        hidden=hidden, reservoir=reservoir, n_cls=n_cls, slab_w=slab_w,
    )

    enc, dec_flat, slab = pl.pallas_call(
        kernel,
        grid=grid,
        out_shape=out_shapes,
        in_specs=in_specs,
        out_specs=out_specs,
        compiler_params=pltpu.CompilerParams(
            dimension_semantics=("parallel",),
            vmem_limit_bytes=vmem_limit,
        ),
        cost_estimate=cost,
    )(xe, we_p, be, wml_b, bml, wzr_b, bzr, wdr_b, bdr)

    enc = enc[:B]
    decoded = dec_flat[:B].reshape(B, C, H, W)
    mu = slab[:B, :latent]
    log_var = slab[:B, latent:2 * latent]
    z = slab[:B, 2 * latent:3 * latent]
    pred = slab[:B, 3 * latent:3 * latent + n_cls]
    return enc, mu, log_var, z, decoded, pred


def _reference_forward(x_nchw, eps, params):
    """Pure-JAX f32 reference (matches the PyTorch module's math)."""
    B, C, H, W = x_nchw.shape
    x = x_nchw.reshape(B, -1).astype(jnp.float32)
    (we, be, wmu, bmu, wlv, blv, wd1, bd1, wd2, bd2, win, wout, bout) = params
    h = jnp.maximum(x @ we + be, 0.0)
    mu = h @ wmu + bmu
    lv = h @ wlv + blv
    z = mu + eps * jnp.exp(0.5 * lv)
    dh = jnp.maximum(z @ wd1 + bd1, 0.0)
    dec = jax.nn.sigmoid(dh @ wd2 + bd2).reshape(B, C, H, W)
    r = jnp.tanh(z @ win)
    pred = r @ wout + bout
    return h, mu, lv, z, dec, pred


def init_params(key, D, hidden, latent, reservoir, n_cls):
    ks = jax.random.split(key, 8)
    s = 0.05
    we = s * jax.random.normal(ks[0], (D, hidden), jnp.float32)
    be = jnp.zeros((1, hidden), jnp.float32)
    wmu = s * jax.random.normal(ks[1], (hidden, latent), jnp.float32)
    bmu = jnp.zeros((1, latent), jnp.float32)
    wlv = s * jax.random.normal(ks[2], (hidden, latent), jnp.float32)
    blv = jnp.zeros((1, latent), jnp.float32)
    wd1 = s * jax.random.normal(ks[3], (latent, hidden), jnp.float32)
    bd1 = jnp.zeros((1, hidden), jnp.float32)
    wd2 = s * jax.random.normal(ks[4], (hidden, D), jnp.float32)
    bd2 = jnp.zeros((1, D), jnp.float32)
    win = s * jax.random.normal(ks[5], (latent, reservoir), jnp.float32)
    wout = s * jax.random.normal(ks[6], (reservoir, n_cls), jnp.float32)
    bout = jnp.zeros((1, n_cls), jnp.float32)
    return (we, be, wmu, bmu, wlv, blv, wd1, bd1, wd2, bd2, win, wout, bout)


if __name__ == "__main__":
    key = jax.random.PRNGKey(0)
    k_x, k_eps, k_p = jax.random.split(key, 3)

    B, C, H, W = 32, 1, 16, 16
    D = C * H * W
    hidden, latent, reservoir, n_cls = 128, 32, 128, 10

    x = jax.random.uniform(k_x, (B, C, H, W), jnp.float32)
    eps = jax.random.normal(k_eps, (B, latent), jnp.float32)
    params = init_params(k_p, D, hidden, latent, reservoir, n_cls)

    # Default tiling: small B -> single grid step (no sub-128 M-tiling).
    outs = method_vae_rc_forward(x, eps, params)
    outs = jax.block_until_ready(outs)

    enc, mu, log_var, z, decoded, pred = outs
    assert enc.shape == (B, hidden)
    assert mu.shape == (B, latent)
    assert log_var.shape == (B, latent)
    assert z.shape == (B, latent)
    assert decoded.shape == (B, C, H, W)
    assert pred.shape == (B, n_cls)

    # Loose check vs. f32 reference (kernel uses bf16 MXU operands).
    refs = _reference_forward(x, eps, params)
    for got, ref in zip(outs, refs):
        assert jnp.all(jnp.isfinite(got))
        assert jnp.allclose(got, ref, rtol=0.0, atol=5e-2)

    print("KERNEL_OK")
</pallas_src>

<mosaic_0001>
module attributes {stable_mosaic.version = 11 : i64} {
  func.func @_vae_rc_kernel(%arg0: i32, %arg1: memref<32x384xf32, #tpu.memory_space<vmem>>, %arg2: memref<256x128xbf16, #tpu.memory_space<vmem>>, %arg3: memref<1x128xf32, #tpu.memory_space<vmem>>, %arg4: memref<128x256xbf16, #tpu.memory_space<vmem>>, %arg5: memref<1x256xf32, #tpu.memory_space<vmem>>, %arg6: memref<32x256xbf16, #tpu.memory_space<vmem>>, %arg7: memref<1x256xf32, #tpu.memory_space<vmem>>, %arg8: memref<256x384xbf16, #tpu.memory_space<vmem>>, %arg9: memref<1x384xf32, #tpu.memory_space<vmem>>, %arg10: memref<32x128xf32, #tpu.memory_space<vmem>>, %arg11: memref<32x256xf32, #tpu.memory_space<vmem>>, %arg12: memref<32x128xf32, #tpu.memory_space<vmem>>) attributes {dimension_semantics = [#tpu.dimension_semantics<parallel>], iteration_bounds = array<i64: 1>, scalar_prefetch = 0 : i64, scratch_operands = 0 : i64, tpu.core_type = #tpu.core_type<tc>, window_params = [{transform_indices = @transform_0, window_bounds = array<i64: 32, 384>}, {pipeline_mode = #tpu.pipeline_mode<synchronous>, transform_indices = @transform_1, window_bounds = array<i64: 256, 128>}, {pipeline_mode = #tpu.pipeline_mode<synchronous>, transform_indices = @transform_2, window_bounds = array<i64: 1, 128>}, {pipeline_mode = #tpu.pipeline_mode<synchronous>, transform_indices = @transform_3, window_bounds = array<i64: 128, 256>}, {pipeline_mode = #tpu.pipeline_mode<synchronous>, transform_indices = @transform_4, window_bounds = array<i64: 1, 256>}, {pipeline_mode = #tpu.pipeline_mode<synchronous>, transform_indices = @transform_5, window_bounds = array<i64: 32, 256>}, {pipeline_mode = #tpu.pipeline_mode<synchronous>, transform_indices = @transform_6, window_bounds = array<i64: 1, 256>}, {pipeline_mode = #tpu.pipeline_mode<synchronous>, transform_indices = @transform_7, window_bounds = array<i64: 256, 384>}, {pipeline_mode = #tpu.pipeline_mode<synchronous>, transform_indices = @transform_8, window_bounds = array<i64: 1, 384>}, {transform_indices = @transform_9, window_bounds = array<i64: 32, 128>}, {transform_indices = @transform_10, window_bounds = array<i64: 32, 256>}, {transform_indices = @transform_11, window_bounds = array<i64: 32, 128>}]} {
    %c0 = arith.constant 0 : index
    %c0_0 = arith.constant 0 : index
    %0 = vector.load %arg1[%c0, %c0_0] : memref<32x384xf32, #tpu.memory_space<vmem>>, vector<32x256xf32>
    %c0_1 = arith.constant 0 : index
    %c256 = arith.constant 256 : index
    %1 = vector.load %arg1[%c0_1, %c256] : memref<32x384xf32, #tpu.memory_space<vmem>>, vector<32x32xf32>
    %2 = arith.truncf %0 : vector<32x256xf32> to vector<32x256xbf16>
    %c0_2 = arith.constant 0 : index
    %c0_3 = arith.constant 0 : index
    %3 = vector.load %arg2[%c0_2, %c0_3] : memref<256x128xbf16, #tpu.memory_space<vmem>>, vector<256x128xbf16>
    %cst = arith.constant dense<0.000000e+00> : vector<32x128xf32>
    %4 = tpu.matmul %2, %3, %cst {dimension_numbers = #tpu.dot_dimension_numbers<[1], [0], [0], [1], [0, 0, 1, 1], [], []>} : vector<32x256xbf16>, vector<256x128xbf16>, vector<32x128xf32> -> vector<32x128xf32>
    %c0_4 = arith.constant 0 : index
    %c0_5 = arith.constant 0 : index
    %5 = vector.load %arg3[%c0_4, %c0_5] : memref<1x128xf32, #tpu.memory_space<vmem>>, vector<1x128xf32>
    %6 = vector.broadcast %5 : vector<1x128xf32> to vector<32x128xf32>
    %7 = arith.addf %4, %6 : vector<32x128xf32>
    %cst_6 = arith.constant 0.000000e+00 : f32
    %8 = vector.broadcast %cst_6 : f32 to vector<32x128xf32>
    %9 = arith.maximumf %7, %8 : vector<32x128xf32>
    %c0_7 = arith.constant 0 : index
    %c0_8 = arith.constant 0 : index
    %10 = vector.load %arg10[%c0_7, %c0_8] : memref<32x128xf32, #tpu.memory_space<vmem>>, vector<32x128xf32>
    tpu.vector_store %arg10[%c0_7, %c0_8], %9 {strides = array<i32>} : memref<32x128xf32, #tpu.memory_space<vmem>>, vector<32x128xf32>,
    %11 = arith.truncf %9 : vector<32x128xf32> to vector<32x128xbf16>
    %c0_9 = arith.constant 0 : index
    %c0_10 = arith.constant 0 : index
    %12 = vector.load %arg4[%c0_9, %c0_10] : memref<128x256xbf16, #tpu.memory_space<vmem>>, vector<128x256xbf16>
    %cst_11 = arith.constant dense<0.000000e+00> : vector<32x256xf32>
    %13 = tpu.matmul %11, %12, %cst_11 {dimension_numbers = #tpu.dot_dimension_numbers<[1], [0], [0], [1], [0, 0, 1, 1], [], []>} : vector<32x128xbf16>, vector<128x256xbf16>, vector<32x256xf32> -> vector<32x256xf32>
    %c0_12 = arith.constant 0 : index
    %c0_13 = arith.constant 0 : index
    %14 = vector.load %arg5[%c0_12, %c0_13] : memref<1x256xf32, #tpu.memory_space<vmem>>, vector<1x256xf32>
    %15 = vector.broadcast %14 : vector<1x256xf32> to vector<32x256xf32>
    %16 = arith.addf %13, %15 : vector<32x256xf32>
    %17 = vector.extract_strided_slice %16 {offsets = [0, 0], sizes = [32, 32], strides = [1, 1]} : vector<32x256xf32> to vector<32x32xf32>
    %18 = vector.extract_strided_slice %16 {offsets = [0, 128], sizes = [32, 32], strides = [1, 1]} : vector<32x256xf32> to vector<32x32xf32>
    %cst_14 = arith.constant 5.000000e-01 : f32
    %19 = vector.broadcast %cst_14 : f32 to vector<32x32xf32>
    %20 = arith.mulf %19, %18 : vector<32x32xf32>
    %21 = math.exp %20 : vector<32x32xf32>
    %22 = arith.mulf %1, %21 : vector<32x32xf32>
    %23 = arith.addf %17, %22 : vector<32x32xf32>
    %24 = arith.truncf %23 : vector<32x32xf32> to vector<32x32xbf16>
    %c0_15 = arith.constant 0 : index
    %c0_16 = arith.constant 0 : index
    %25 = vector.load %arg6[%c0_15, %c0_16] : memref<32x256xbf16, #tpu.memory_space<vmem>>, vector<32x256xbf16>
    %cst_17 = arith.constant dense<0.000000e+00> : vector<32x256xf32>
    %26 = tpu.matmul %24, %25, %cst_17 {dimension_numbers = #tpu.dot_dimension_numbers<[1], [0], [0], [1], [0, 0, 1, 1], [], []>} : vector<32x32xbf16>, vector<32x256xbf16>, vector<32x256xf32> -> vector<32x256xf32>
    %c0_18 = arith.constant 0 : index
    %c0_19 = arith.constant 0 : index
    %27 = vector.load %arg7[%c0_18, %c0_19] : memref<1x256xf32, #tpu.memory_space<vmem>>, vector<1x256xf32>
    %28 = vector.broadcast %27 : vector<1x256xf32> to vector<32x256xf32>
    %29 = arith.addf %26, %28 : vector<32x256xf32>
    %30 = vector.extract_strided_slice %29 {offsets = [0, 0], sizes = [32, 128], strides = [1, 1]} : vector<32x256xf32> to vector<32x128xf32>
    %cst_20 = arith.constant 0.000000e+00 : f32
    %31 = vector.broadcast %cst_20 : f32 to vector<32x128xf32>
    %32 = arith.maximumf %30, %31 : vector<32x128xf32>
    %33 = vector.extract_strided_slice %29 {offsets = [0, 128], sizes = [32, 128], strides = [1, 1]} : vector<32x256xf32> to vector<32x128xf32>
    %34 = math.tanh %33 : vector<32x128xf32>
    %35 = tpu.concatenate %32, %34 in 1 : vector<32x128xf32>, vector<32x128xf32> -> vector<32x256xf32>
    %36 = arith.truncf %35 : vector<32x256xf32> to vector<32x256xbf16>
    %c0_21 = arith.constant 0 : index
    %c0_22 = arith.constant 0 : index
    %37 = vector.load %arg8[%c0_21, %c0_22] : memref<256x384xbf16, #tpu.memory_space<vmem>>, vector<256x384xbf16>
    %cst_23 = arith.constant dense<0.000000e+00> : vector<32x384xf32>
    %38 = tpu.matmul %36, %37, %cst_23 {dimension_numbers = #tpu.dot_dimension_numbers<[1], [0], [0], [1], [0, 0, 1, 1], [], []>} : vector<32x256xbf16>, vector<256x384xbf16>, vector<32x384xf32> -> vector<32x384xf32>
    %c0_24 = arith.constant 0 : index
    %c0_25 = arith.constant 0 : index
    %39 = vector.load %arg9[%c0_24, %c0_25] : memref<1x384xf32, #tpu.memory_space<vmem>>, vector<1x384xf32>
    %40 = vector.broadcast %39 : vector<1x384xf32> to vector<32x384xf32>
    %41 = arith.addf %38, %40 : vector<32x384xf32>
    %42 = vector.extract_strided_slice %41 {offsets = [0, 0], sizes = [32, 256], strides = [1, 1]} : vector<32x384xf32> to vector<32x256xf32>
    %43 = arith.negf %42 : vector<32x256xf32>
    %44 = math.exp %43 : vector<32x256xf32>
    %cst_26 = arith.constant 1.000000e+00 : f32
    %45 = vector.broadcast %cst_26 : f32 to vector<32x256xf32>
    %46 = arith.addf %45, %44 : vector<32x256xf32>
    %47 = arith.divf %45, %46 : vector<32x256xf32>
    %c0_27 = arith.constant 0 : index
    %c0_28 = arith.constant 0 : index
    %48 = vector.load %arg11[%c0_27, %c0_28] : memref<32x256xf32, #tpu.memory_space<vmem>>, vector<32x256xf32>
    tpu.vector_store %arg11[%c0_27, %c0_28], %47 {strides = array<i32>} : memref<32x256xf32, #tpu.memory_space<vmem>>, vector<32x256xf32>,
    %49 = vector.extract_strided_slice %41 {offsets = [0, 256], sizes = [32, 10], strides = [1, 1]} : vector<32x384xf32> to vector<32x10xf32>
    %cst_29 = arith.constant 0.000000e+00 : f32
    %50 = vector.broadcast %cst_29 : f32 to vector<32x22xf32>
    %51 = tpu.concatenate %17, %18, %23, %49, %50 in 1 : vector<32x32xf32>, vector<32x32xf32>, vector<32x32xf32>, vector<32x10xf32>, vector<32x22xf32> -> vector<32x128xf32>
    %c0_30 = arith.constant 0 : index
    %c0_31 = arith.constant 0 : index
    %52 = vector.load %arg12[%c0_30, %c0_31] : memref<32x128xf32, #tpu.memory_space<vmem>>, vector<32x128xf32>
    tpu.vector_store %arg12[%c0_30, %c0_31], %51 {strides = array<i32>} : memref<32x128xf32, #tpu.memory_space<vmem>>, vector<32x128xf32>,
    return
  }
  func.func @transform_0(%arg0: i32) -> (i32, i32) {
    %c0_i32 = arith.constant 0 : i32
    %c0_i32_0 = arith.constant 0 : i32
    return %arg0, %c0_i32 : i32, i32
  }
  func.func @transform_1(%arg0: i32) -> (i32, i32) {
    %c0_i32 = arith.constant 0 : i32
    %c0_i32_0 = arith.constant 0 : i32
    %c0_i32_1 = arith.constant 0 : i32
    return %c0_i32, %c0_i32_0 : i32, i32
  }
  func.func @transform_2(%arg0: i32) -> (i32, i32) {
    %c0_i32 = arith.constant 0 : i32
    %c0_i32_0 = arith.constant 0 : i32
    %c0_i32_1 = arith.constant 0 : i32
    return %c0_i32, %c0_i32_0 : i32, i32
  }
  func.func @transform_3(%arg0: i32) -> (i32, i32) {
    %c0_i32 = arith.constant 0 : i32
    %c0_i32_0 = arith.constant 0 : i32
    %c0_i32_1 = arith.constant 0 : i32
    return %c0_i32, %c0_i32_0 : i32, i32
  }
  func.func @transform_4(%arg0: i32) -> (i32, i32) {
    %c0_i32 = arith.constant 0 : i32
    %c0_i32_0 = arith.constant 0 : i32
    %c0_i32_1 = arith.constant 0 : i32
    return %c0_i32, %c0_i32_0 : i32, i32
  }
  func.func @transform_5(%arg0: i32) -> (i32, i32) {
    %c0_i32 = arith.constant 0 : i32
    %c0_i32_0 = arith.constant 0 : i32
    %c0_i32_1 = arith.constant 0 : i32
    return %c0_i32, %c0_i32_0 : i32, i32
  }
  func.func @transform_6(%arg0: i32) -> (i32, i32) {
    %c0_i32 = arith.constant 0 : i32
    %c0_i32_0 = arith.constant 0 : i32
    %c0_i32_1 = arith.constant 0 : i32
    return %c0_i32, %c0_i32_0 : i32, i32
  }
  func.func @transform_7(%arg0: i32) -> (i32, i32) {
    %c0_i32 = arith.constant 0 : i32
    %c0_i32_0 = arith.constant 0 : i32
    %c0_i32_1 = arith.constant 0 : i32
    return %c0_i32, %c0_i32_0 : i32, i32
  }
  func.func @transform_8(%arg0: i32) -> (i32, i32) {
    %c0_i32 = arith.constant 0 : i32
    %c0_i32_0 = arith.constant 0 : i32
    %c0_i32_1 = arith.constant 0 : i32
    return %c0_i32, %c0_i32_0 : i32, i32
  }
  func.func @transform_9(%arg0: i32) -> (i32, i32) {
    %c0_i32 = arith.constant 0 : i32
    %c0_i32_0 = arith.constant 0 : i32
    return %arg0, %c0_i32 : i32, i32
  }
  func.func @transform_10(%arg0: i32) -> (i32, i32) {
    %c0_i32 = arith.constant 0 : i32
    %c0_i32_0 = arith.constant 0 : i32
    return %arg0, %c0_i32 : i32, i32
  }
  func.func @transform_11(%arg0: i32) -> (i32, i32) {
    %c0_i32 = arith.constant 0 : i32
    %c0_i32_0 = arith.constant 0 : i32
    return %arg0, %c0_i32 : i32, i32
  }
}

</mosaic_0001>

<llo_original>
// kernel: tpu_custom_call.1
$region0: #{tpu_custom_call.1}
  #allocation0 [shape = 'u32[]', space=smem, size = 0x4, offset = 0x4, fixed_abs, tag = 'smem constant byte address 0x4 - core index']
  #allocation1 [shape = 'u32[144,128]{1,0:T(1,128)}', space=vmem, size = 0x12000, scoped, tag = 'internal scratch']
  %s0 = inlined_call_operand.hbm [shape: f32[32,384], index: 0, kind: input, shape index: {}]
  %s1 = inlined_call_operand.hbm [shape: bf16[256,128], index: 1, kind: input, shape index: {}]
  %s2 = inlined_call_operand.hbm [shape: f32[1,128], index: 2, kind: input, shape index: {}]
  %s3 = inlined_call_operand.hbm [shape: bf16[128,256], index: 3, kind: input, shape index: {}]
  %s4 = inlined_call_operand.vmem [shape: f32[1,256], index: 4, kind: input, shape index: {}]
  %s5 = inlined_call_operand.hbm [shape: bf16[32,256], index: 5, kind: input, shape index: {}]
  %s6 = inlined_call_operand.vmem [shape: f32[1,256], index: 6, kind: input, shape index: {}]
  %s7 = inlined_call_operand.hbm [shape: bf16[256,384], index: 7, kind: input, shape index: {}]
  %s8 = inlined_call_operand.vmem [shape: f32[1,384], index: 8, kind: input, shape index: {}]
  %s9 = inlined_call_operand.hbm [shape: f32[32,128], index: 9, kind: output, shape index: {0}]
  %s10 = inlined_call_operand.hbm [shape: f32[32,256], index: 10, kind: output, shape index: {1}]
  %s11 = inlined_call_operand.hbm [shape: f32[32,128], index: 11, kind: output, shape index: {2}]
  %12 = xla_tuple %s9, %s10, %s11
  %s13 = sld [smem:[#allocation0]]
  $region86: #{tpu_custom_call.1} parent=0
    _
  %s15 = ssub.s32 1, %s13
  %s16 = scalar_select 0, %s15, %s13
  $region1: #{tpu_custom_call.1} parent=0
    #allocation2 [shape = 'u8[49152]{0}', space=vmem, size = 0xc000, scoped, tag = 'input window, operand 0, single buffered']
    #allocation3 [shape = 's32[1]{0}', space=sflag, size = 0x4, scoped, tag = 'scoped memory for tpu_custom_call.1']
    #allocation4 [shape = 's32[1]{0}', space=sflag, size = 0x4, scoped, tag = 'scoped memory for tpu_custom_call.1']
    #allocation5 [shape = 'u8[65536]{0}', space=vmem, size = 0x10000, scoped, tag = 'input window, operand 1, single buffered']
    #allocation6 [shape = 's32[1]{0}', space=sflag, size = 0x4, scoped, tag = 'scoped memory for tpu_custom_call.1']
    #allocation7 [shape = 'u8[512]{0}', space=vmem, size = 0x400, scoped, tag = 'input window, operand 2, single buffered']
    #allocation8 [shape = 'u8[65536]{0}', space=vmem, size = 0x10000, scoped, tag = 'input window, operand 3, single buffered']
    #allocation9 [shape = 's32[1]{0}', space=sflag, size = 0x4, scoped, tag = 'scoped memory for tpu_custom_call.1']
    #allocation10 [shape = 'u8[16384]{0}', space=vmem, size = 0x4000, scoped, tag = 'input window, operand 5, single buffered']
    #allocation11 [shape = 'u8[196608]{0}', space=vmem, size = 0x30000, scoped, tag = 'input window, operand 7, single buffered']
    #allocation12 [shape = 's32[1]{0}', space=sflag, size = 0x4, scoped, tag = 'scoped memory for tpu_custom_call.1']
    #allocation13 [shape = 'u8[16384]{0}', space=vmem, size = 0x4000, scoped, tag = 'output window, operand 0, single buffered']
    #allocation14 [shape = 'u8[32768]{0}', space=vmem, size = 0x8000, scoped, tag = 'output window, operand 1, single buffered']
    #allocation15 [shape = 's32[1]{0}', space=sflag, size = 0x4, scoped, tag = 'scoped memory for tpu_custom_call.1']
    #allocation16 [shape = 'u8[16384]{0}', space=vmem, size = 0x4000, scoped, tag = 'output window, operand 2, single buffered']
    %17 = vsyncpa [#allocation3], 0
    %18 = vsyncpa [#allocation6], 0
    %19 = vsyncpa [#allocation9], 0
    %20 = vsyncpa [#allocation12], 0
    %21 = vsyncpa [#allocation4], 0
    %22 = vsyncpa [#allocation15], 0
    // Predicated region
    $region2: #{tpu_custom_call.1} parent=1 // pred_check
      _
    $region3: #{tpu_custom_call.1} parent=1 // pred_check_branch
      %24 = sbr.rel (0) target = $region5
    $region4: #{tpu_custom_call.1} parent=1 // pred_region
      %s26 = ssub.s32 1536, 1536
      %27 = vsyncadd [#allocation3], %s26
      %s28 = sshll.u32 [#allocation2], 4
      %s29 = int_to_ptr.vmem [resolvable:$true] %s28
      %34 = dma.hbm_to_vmem [thread:$0]  %s0, 1536, %s29, [#allocation3], 384, 384, 24
    $region5: #{tpu_custom_call.1} parent=1 // pred_fallthru
      _
    // Predicated region
    $region6: #{tpu_custom_call.1} parent=1 // pred_check
      _
    $region7: #{tpu_custom_call.1} parent=1 // pred_check_branch
      %36 = sbr.rel (0) target = $region9
    $region8: #{tpu_custom_call.1} parent=1 // pred_region
      %s38 = ssub.s32 2048, 2048
      %39 = vsyncadd [#allocation6], %s38
      %s40 = sshll.u32 [#allocation5], 4
      %s41 = int_to_ptr.vmem [resolvable:$true] %s40
      %46 = dma.hbm_to_vmem [thread:$0]  %s1, 2048, %s41, [#allocation6], 64, 64, 4
    $region9: #{tpu_custom_call.1} parent=1 // pred_fallthru
      _
    // Predicated region
    $region10: #{tpu_custom_call.1} parent=1 // pred_check
      _
    $region11: #{tpu_custom_call.1} parent=1 // pred_check_branch
      %48 = sbr.rel (0) target = $region13
    $region12: #{tpu_custom_call.1} parent=1 // pred_region
      %s50 = ssub.s32 16, 16
      %51 = vsyncadd [#allocation6], %s50
      %s53 = sshll.u32 [#allocation7], 4
      %s54 = int_to_ptr.vmem [resolvable:$true] %s53
      %56 = dma.hbm_to_vmem [thread:$0]  %s2, 16, %s54, [#allocation6]
    $region13: #{tpu_custom_call.1} parent=1 // pred_fallthru
      _
    // Predicated region
    $region14: #{tpu_custom_call.1} parent=1 // pred_check
      _
    $region15: #{tpu_custom_call.1} parent=1 // pred_check_branch
      %58 = sbr.rel (0) target = $region17
    $region16: #{tpu_custom_call.1} parent=1 // pred_region
      %s60 = ssub.s32 2048, 2048
      %61 = vsyncadd [#allocation9], %s60
      %s62 = sshll.u32 [#allocation8], 4
      %s63 = int_to_ptr.vmem [resolvable:$true] %s62
      %68 = dma.hbm_to_vmem [thread:$0]  %s3, 2048, %s63, [#allocation9], 128, 128, 8
    $region17: #{tpu_custom_call.1} parent=1 // pred_fallthru
      _
    // Predicated region
    $region18: #{tpu_custom_call.1} parent=1 // pred_check
      _
    $region19: #{tpu_custom_call.1} parent=1 // pred_check_branch
      %70 = sbr.rel (0) target = $region21
    $region20: #{tpu_custom_call.1} parent=1 // pred_region
      _
    $region21: #{tpu_custom_call.1} parent=1 // pred_fallthru
      _
    // Predicated region
    $region22: #{tpu_custom_call.1} parent=1 // pred_check
      _
    $region23: #{tpu_custom_call.1} parent=1 // pred_check_branch
      %72 = sbr.rel (0) target = $region25
    $region24: #{tpu_custom_call.1} parent=1 // pred_region
      %s74 = ssub.s32 512, 512
      %75 = vsyncadd [#allocation9], %s74
      %s76 = sshll.u32 [#allocation10], 4
      %s77 = int_to_ptr.vmem [resolvable:$true] %s76
      %82 = dma.hbm_to_vmem [thread:$0]  %s5, 512, %s77, [#allocation9], 128, 128, 8
    $region25: #{tpu_custom_call.1} parent=1 // pred_fallthru
      _
    // Predicated region
    $region26: #{tpu_custom_call.1} parent=1 // pred_check
      _
    $region27: #{tpu_custom_call.1} parent=1 // pred_check_branch
      %84 = sbr.rel (0) target = $region29
    $region28: #{tpu_custom_call.1} parent=1 // pred_region
      _
    $region29: #{tpu_custom_call.1} parent=1 // pred_fallthru
      _
    // Predicated region
    $region30: #{tpu_custom_call.1} parent=1 // pred_check
      _
    $region31: #{tpu_custom_call.1} parent=1 // pred_check_branch
      %86 = sbr.rel (0) target = $region33
    $region32: #{tpu_custom_call.1} parent=1 // pred_region
      %s88 = ssub.s32 6144, 6144
      %89 = vsyncadd [#allocation12], %s88
      %s90 = sshll.u32 [#allocation11], 4
      %s91 = int_to_ptr.vmem [resolvable:$true] %s90
      %96 = dma.hbm_to_vmem [thread:$0]  %s7, 6144, %s91, [#allocation12], 192, 192, 12
    $region33: #{tpu_custom_call.1} parent=1 // pred_fallthru
      _
    // Predicated region
    $region34: #{tpu_custom_call.1} parent=1 // pred_check
      _
    $region35: #{tpu_custom_call.1} parent=1 // pred_check_branch
      %98 = sbr.rel (0) target = $region37
    $region36: #{tpu_custom_call.1} parent=1 // pred_region
      _
    $region37: #{tpu_custom_call.1} parent=1 // pred_fallthru
      _
    // Predicated region
    $region38: #{tpu_custom_call.1} parent=1 // pred_check
      _
    $region39: #{tpu_custom_call.1} parent=1 // pred_check_branch
      %100 = sbr.rel (0) target = $region41
    $region40: #{tpu_custom_call.1} parent=1 // pred_region
      %101 = dma.done [#allocation3], 1536
    $region41: #{tpu_custom_call.1} parent=1 // pred_fallthru
      _
    // Predicated region
    $region42: #{tpu_custom_call.1} parent=1 // pred_check
      _
    $region43: #{tpu_custom_call.1} parent=1 // pred_check_branch
      %103 = sbr.rel (0) target = $region45
    $region44: #{tpu_custom_call.1} parent=1 // pred_region
      %104 = dma.done [#allocation6], 2048
    $region45: #{tpu_custom_call.1} parent=1 // pred_fallthru
      _
    // Predicated region
    $region46: #{tpu_custom_call.1} parent=1 // pred_check
      _
    $region47: #{tpu_custom_call.1} parent=1 // pred_check_branch
      %106 = sbr.rel (0) target = $region49
    $region48: #{tpu_custom_call.1} parent=1 // pred_region
      %107 = dma.done [#allocation6], 16
    $region49: #{tpu_custom_call.1} parent=1 // pred_fallthru
      _
    // Predicated region
    $region50: #{tpu_custom_call.1} parent=1 // pred_check
      _
    $region51: #{tpu_custom_call.1} parent=1 // pred_check_branch
      %109 = sbr.rel (0) target = $region53
    $region52: #{tpu_custom_call.1} parent=1 // pred_region
      %110 = dma.done [#allocation9], 2048
    $region53: #{tpu_custom_call.1} parent=1 // pred_fallthru
      _
    // Predicated region
    $region54: #{tpu_custom_call.1} parent=1 // pred_check
      _
    $region55: #{tpu_custom_call.1} parent=1 // pred_check_branch
      %112 = sbr.rel (0) target = $region57
    $region56: #{tpu_custom_call.1} parent=1 // pred_region
      %113 = dma.done [#allocation9], 512
    $region57: #{tpu_custom_call.1} parent=1 // pred_fallthru
      _
    // Predicated region
    $region58: #{tpu_custom_call.1} parent=1 // pred_check
      _
    $region59: #{tpu_custom_call.1} parent=1 // pred_check_branch
      %115 = sbr.rel (0) target = $region61
    $region60: #{tpu_custom_call.1} parent=1 // pred_region
      %116 = dma.done [#allocation12], 6144
    $region61: #{tpu_custom_call.1} parent=1 // pred_fallthru
      _
    %v118 = vld [vmem:[#allocation2] sm:$0xff]
    %v119 = vld [vmem:[#allocation2 + $0x8] sm:$0xff]
    %v120 = vld [vmem:[#allocation2 + $0x18] sm:$0xff]
    %v121 = vld [vmem:[#allocation2 + $0x20] sm:$0xff]
    %v122 = vld [vmem:[#allocation2 + $0x30] sm:$0xff]
    %v123 = vld [vmem:[#allocation2 + $0x38] sm:$0xff]
    %v124 = vld [vmem:[#allocation2 + $0x48] sm:$0xff]
    %v125 = vld [vmem:[#allocation2 + $0x50] sm:$0xff]
    %v126 = vld [vmem:[#allocation2 + $0x10] sm:$0xff]
    %v127 = vld [vmem:[#allocation2 + $0x28] sm:$0xff]
    %v128 = vld [vmem:[#allocation2 + $0x40] sm:$0xff]
    %v129 = vld [vmem:[#allocation2 + $0x58] sm:$0xff]
    %v130 = vpack.c.bf16 %v120, %v118
    %v131 = vpack.c.bf16 %v121, %v119
    %v132 = vpack.c.bf16 %v124, %v122
    %v133 = vpack.c.bf16 %v125, %v123
    %v134 = vld [vmem:[#allocation5] sm:$0xf]
    %v135 = vld [vmem:[#allocation5 + $0x4] sm:$0xf]
    %v136 = vld [vmem:[#allocation5 + $0x8] sm:$0xf]
    %v137 = vld [vmem:[#allocation5 + $0xc] sm:$0xf]
    %v138 = vld [vmem:[#allocation5 + $0x10] sm:$0xf]
    %v139 = vld [vmem:[#allocation5 + $0x14] sm:$0xf]
    %v140 = vld [vmem:[#allocation5 + $0x18] sm:$0xf]
    %v141 = vld [vmem:[#allocation5 + $0x1c] sm:$0xf]
    %v142 = vld [vmem:[#allocation5 + $0x20] sm:$0xf]
    %v143 = vld [vmem:[#allocation5 + $0x24] sm:$0xf]
    %v144 = vld [vmem:[#allocation5 + $0x28] sm:$0xf]
    %v145 = vld [vmem:[#allocation5 + $0x2c] sm:$0xf]
    %v146 = vld [vmem:[#allocation5 + $0x30] sm:$0xf]
    %v147 = vld [vmem:[#allocation5 + $0x34] sm:$0xf]
    %v148 = vld [vmem:[#allocation5 + $0x38] sm:$0xf]
    %v149 = vld [vmem:[#allocation5 + $0x3c] sm:$0xf]
    %v150 = vld [vmem:[#allocation5 + $0x40] sm:$0xf]
    %v151 = vld [vmem:[#allocation5 + $0x44] sm:$0xf]
    %v152 = vld [vmem:[#allocation5 + $0x48] sm:$0xf]
    %v153 = vld [vmem:[#allocation5 + $0x4c] sm:$0xf]
    %v154 = vld [vmem:[#allocation5 + $0x50] sm:$0xf]
    %v155 = vld [vmem:[#allocation5 + $0x54] sm:$0xf]
    %v156 = vld [vmem:[#allocation5 + $0x58] sm:$0xf]
    %v157 = vld [vmem:[#allocation5 + $0x5c] sm:$0xf]
    %v158 = vld [vmem:[#allocation5 + $0x60] sm:$0xf]
    %v159 = vld [vmem:[#allocation5 + $0x64] sm:$0xf]
    %v160 = vld [vmem:[#allocation5 + $0x68] sm:$0xf]
    %v161 = vld [vmem:[#allocation5 + $0x6c] sm:$0xf]
    %v162 = vld [vmem:[#allocation5 + $0x70] sm:$0xf]
    %v163 = vld [vmem:[#allocation5 + $0x74] sm:$0xf]
    %v164 = vld [vmem:[#allocation5 + $0x78] sm:$0xf]
    %v165 = vld [vmem:[#allocation5 + $0x7c] sm:$0xf]
    %v166 = vld [vmem:[#allocation7] sm:$0x1]
    %v168 = vlaneseq
    %v169 = vshrl.u32 %v168, 7
    %v170 = vsub.s32 0, %v169
    %v171 = vrot.slane %v166, %v170
    %v205 = vunpack.c.l.b16 %v134
    %v206 = vunpack.c.l.b16 %v135
    %v207 = vunpack.c.l.b16 %v136
    %v208 = vunpack.c.l.b16 %v137
    %v209 = vunpack.c.l.b16 %v138
    %v210 = vunpack.c.l.b16 %v139
    %v211 = vunpack.c.l.b16 %v140
    %v212 = vunpack.c.l.b16 %v141
    %v213 = vunpack.c.l.b16 %v142
    %v214 = vunpack.c.l.b16 %v143
    %v215 = vunpack.c.l.b16 %v144
    %v216 = vunpack.c.l.b16 %v145
    %v217 = vunpack.c.l.b16 %v146
    %v218 = vunpack.c.l.b16 %v147
    %v219 = vunpack.c.l.b16 %v148
    %v220 = vunpack.c.l.b16 %v149
    %v221 = vunpack.c.l.b16 %v150
    %v222 = vunpack.c.l.b16 %v151
    %v223 = vunpack.c.l.b16 %v152
    %v224 = vunpack.c.l.b16 %v153
    %v225 = vunpack.c.l.b16 %v154
    %v226 = vunpack.c.l.b16 %v155
    %v227 = vunpack.c.l.b16 %v156
    %v228 = vunpack.c.l.b16 %v157
    %v229 = vunpack.c.l.b16 %v158
    %v230 = vunpack.c.l.b16 %v159
    %v231 = vunpack.c.l.b16 %v160
    %v232 = vunpack.c.l.b16 %v161
    %v233 = vunpack.c.l.b16 %v162
    %v234 = vunpack.c.l.b16 %v163
    %v235 = vunpack.c.l.b16 %v164
    %v236 = vunpack.c.l.b16 %v165
    %v237 = vpack.c.b16 %v206, %v205
    %v238 = vpack.c.b16 %v208, %v207
    %v239 = vpack.c.b16 %v210, %v209
    %v240 = vpack.c.b16 %v212, %v211
    %v241 = vpack.c.b16 %v214, %v213
    %v242 = vpack.c.b16 %v216, %v215
    %v243 = vpack.c.b16 %v218, %v217
    %v244 = vpack.c.b16 %v220, %v219
    %v245 = vpack.c.b16 %v222, %v221
    %v246 = vpack.c.b16 %v224, %v223
    %v247 = vpack.c.b16 %v226, %v225
    %v248 = vpack.c.b16 %v228, %v227
    %v249 = vpack.c.b16 %v230, %v229
    %v250 = vpack.c.b16 %v232, %v231
    %v251 = vpack.c.b16 %v234, %v233
    %v252 = vpack.c.b16 %v236, %v235
    %269 = vmatprep.subr.bf16.mxu0 0
    %270 = vmatpush1.bf16.msra.mxu0 %v237
    %271 = vmatprep.subr.bf16.mxu0 0
    %272 = vmatpush1.bf16.msra.mxu0 %v238
    %273 = vmatprep.subr.bf16.mxu0 0
    %274 = vmatpush1.bf16.msra.mxu0 %v239
    %275 = vmatprep.subr.bf16.mxu0 0
    %276 = vmatpush1.bf16.msra.mxu0 %v240
    %277 = vmatprep.subr.bf16.mxu0 0
    %278 = vmatpush1.bf16.msra.mxu0 %v241
    %279 = vmatprep.subr.bf16.mxu0 0
    %280 = vmatpush1.bf16.msra.mxu0 %v242
    %281 = vmatprep.subr.bf16.mxu0 0
    %282 = vmatpush1.bf16.msra.mxu0 %v243
    %283 = vmatprep.subr.bf16.mxu0 0
    %284 = vmatpush1.bf16.msra.mxu0 %v244
    %285 = vmatprep.subr.bf16.mxu0 0
    %286 = vmatpush1.bf16.msra.mxu0 %v245
    %287 = vmatprep.subr.bf16.mxu0 0
    %288 = vmatpush1.bf16.msra.mxu0 %v246
    %289 = vmatprep.subr.bf16.mxu0 0
    %290 = vmatpush1.bf16.msra.mxu0 %v247
    %291 = vmatprep.subr.bf16.mxu0 0
    %292 = vmatpush1.bf16.msra.mxu0 %v248
    %293 = vmatprep.subr.bf16.mxu0 0
    %294 = vmatpush1.bf16.msra.mxu0 %v249
    %295 = vmatprep.subr.bf16.mxu0 0
    %296 = vmatpush1.bf16.msra.mxu0 %v250
    %297 = vmatprep.subr.bf16.mxu0 0
    %298 = vmatpush1.bf16.msra.mxu0 %v251
    %299 = vmatprep.subr.bf16.mxu0 0
    %300 = vmatpush1.bf16.msra.mxu0 %v252
    %301 = vmatprep.mubr.bf16.mxu0 %v131
    %302 = vmatmul.mubr.bf16.gmra.mrb[0].mxu0 %v130
    %v303 = vpop.f32.mrb[0].mxu0
    %v304 = vadd.f32 %v171, %v303
    %v305 = vpop.f32.mrb[0].mxu0
    %v306 = vpop.f32.mrb[0].mxu0
    %v307 = vadd.f32 %v171, %v306
    %v308 = vpop.f32.mrb[0].mxu0
    %309 = vmatprep.mubr.bf16.mxu0 %v133
    %310 = vmatmul.mubr.bf16.gmra.mrb[0].mxu0 %v132
    %v311 = vpop.f32.mrb[0].mxu0
    %v312 = vadd.f32 %v171, %v311
    %v313 = vpop.f32.mrb[0].mxu0
    %v314 = vpop.f32.mrb[0].mxu0
    %v315 = vadd.f32 %v171, %v314
    %v316 = vpop.f32.mrb[0].mxu0
    %317 = vdwg.mxu0
    %v318 = vmax.f32 %v304, 0.0
    %v319 = vmax.f32 %v307, 0.0
    %v320 = vmax.f32 %v312, 0.0
    %v321 = vmax.f32 %v315, 0.0
    %322 = vst [vmem:[#allocation13] sm:$0xff] %v318
    %323 = vst [vmem:[#allocation13 + $0x8] sm:$0xff] %v319
    %324 = vst [vmem:[#allocation13 + $0x10] sm:$0xff] %v320
    %325 = vst [vmem:[#allocation13 + $0x18] sm:$0xff] %v321
    %v326 = vpack.c.bf16 %v319, %v318
    %v327 = vpack.c.bf16 %v321, %v320
    %v328 = vld [vmem:[#allocation8] sm:$0xff]
    %v329 = vld [vmem:[#allocation8 + $0x8] sm:$0xff]
    %v330 = vld [vmem:[#allocation8 + $0x10] sm:$0xff]
    %v331 = vld [vmem:[#allocation8 + $0x18] sm:$0xff]
    %v332 = vld [vmem:[#allocation8 + $0x20] sm:$0xff]
    %v333 = vld [vmem:[#allocation8 + $0x28] sm:$0xff]
    %v334 = vld [vmem:[#allocation8 + $0x30] sm:$0xff]
    %v335 = vld [vmem:[#allocation8 + $0x38] sm:$0xff]
    %v336 = vld [vmem:[#allocation8 + $0x40] sm:$0xff]
    %v337 = vld [vmem:[#allocation8 + $0x48] sm:$0xff]
    %v338 = vld [vmem:[#allocation8 + $0x50] sm:$0xff]
    %v339 = vld [vmem:[#allocation8 + $0x58] sm:$0xff]
    %v340 = vld [vmem:[#allocation8 + $0x60] sm:$0xff]
    %v341 = vld [vmem:[#allocation8 + $0x68] sm:$0xff]
    %v342 = vld [vmem:[#allocation8 + $0x70] sm:$0xff]
    %v343 = vld [vmem:[#allocation8 + $0x78] sm:$0xff]
    %v344 = vld [vmem:[%s4] sm:$0x3]
    %v346 = vlaneseq
    %v347 = vshrl.u32 %v346, 7
    %v348 = vsub.s32 0, %v347
    %v349 = vrot.slane %v344, %v348
    %v350 = vlaneseq
    %v351 = vshrl.u32 %v350, 7
    %v352 = vsub.s32 1, %v351
    %v353 = vrot.slane %v344, %v352
    %v372 = vunpack.c.l.b16 %v328
    %v373 = vunpack.c.h.b16 %v328
    %v374 = vunpack.c.l.b16 %v329
    %v375 = vunpack.c.h.b16 %v329
    %v376 = vunpack.c.l.b16 %v330
    %v377 = vunpack.c.h.b16 %v330
    %v378 = vunpack.c.l.b16 %v331
    %v379 = vunpack.c.h.b16 %v331
    %v380 = vunpack.c.l.b16 %v332
    %v381 = vunpack.c.h.b16 %v332
    %v382 = vunpack.c.l.b16 %v333
    %v383 = vunpack.c.h.b16 %v333
    %v384 = vunpack.c.l.b16 %v334
    %v385 = vunpack.c.h.b16 %v334
    %v386 = vunpack.c.l.b16 %v335
    %v387 = vunpack.c.h.b16 %v335
    %v388 = vunpack.c.l.b16 %v336
    %v389 = vunpack.c.h.b16 %v336
    %v390 = vunpack.c.l.b16 %v337
    %v391 = vunpack.c.h.b16 %v337
    %v392 = vunpack.c.l.b16 %v338
    %v393 = vunpack.c.h.b16 %v338
    %v394 = vunpack.c.l.b16 %v339
    %v395 = vunpack.c.h.b16 %v339
    %v396 = vunpack.c.l.b16 %v340
    %v397 = vunpack.c.h.b16 %v340
    %v398 = vunpack.c.l.b16 %v341
    %v399 = vunpack.c.h.b16 %v341
    %v400 = vunpack.c.l.b16 %v342
    %v401 = vunpack.c.h.b16 %v342
    %v402 = vunpack.c.l.b16 %v343
    %v403 = vunpack.c.h.b16 %v343
    %v404 = vpack.c.b16 %v374, %v372
    %v405 = vpack.c.b16 %v375, %v373
    %v406 = vpack.c.b16 %v378, %v376
    %v407 = vpack.c.b16 %v379, %v377
    %v408 = vpack.c.b16 %v382, %v380
    %v409 = vpack.c.b16 %v383, %v381
    %v410 = vpack.c.b16 %v386, %v384
    %v411 = vpack.c.b16 %v387, %v385
    %v412 = vpack.c.b16 %v390, %v388
    %v413 = vpack.c.b16 %v391, %v389
    %v414 = vpack.c.b16 %v394, %v392
    %v415 = vpack.c.b16 %v395, %v393
    %v416 = vpack.c.b16 %v398, %v396
    %v417 = vpack.c.b16 %v399, %v397
    %v418 = vpack.c.b16 %v402, %v400
    %v419 = vpack.c.b16 %v403, %v401
    %436 = vmatprep.subr.bf16.mxu0 %v405
    %437 = vmatpush1.bf16.msra.mxu0 %v404
    %438 = vmatprep.subr.bf16.mxu0 %v407
    %439 = vmatpush1.bf16.msra.mxu0 %v406
    %440 = vmatprep.subr.bf16.mxu0 %v409
    %441 = vmatpush1.bf16.msra.mxu0 %v408
    %442 = vmatprep.subr.bf16.mxu0 %v411
    %443 = vmatpush1.bf16.msra.mxu0 %v410
    %444 = vmatprep.subr.bf16.mxu0 %v413
    %445 = vmatpush1.bf16.msra.mxu0 %v412
    %446 = vmatprep.subr.bf16.mxu0 %v415
    %447 = vmatpush1.bf16.msra.mxu0 %v414
    %448 = vmatprep.subr.bf16.mxu0 %v417
    %449 = vmatpush1.bf16.msra.mxu0 %v416
    %450 = vmatprep.subr.bf16.mxu0 %v419
    %451 = vmatpush1.bf16.msra.mxu0 %v418
    %452 = vmatprep.subr.bf16.mxu0 0
    %453 = vmatpush1.bf16.msra.mxu0 0
    %454 = vmatprep.subr.bf16.mxu0 0
    %455 = vmatpush1.bf16.msra.mxu0 0
    %456 = vmatprep.subr.bf16.mxu0 0
    %457 = vmatpush1.bf16.msra.mxu0 0
    %458 = vmatprep.subr.bf16.mxu0 0
    %459 = vmatpush1.bf16.msra.mxu0 0
    %460 = vmatprep.subr.bf16.mxu0 0
    %461 = vmatpush1.bf16.msra.mxu0 0
    %462 = vmatprep.subr.bf16.mxu0 0
    %463 = vmatpush1.bf16.msra.mxu0 0
    %464 = vmatprep.subr.bf16.mxu0 0
    %465 = vmatpush1.bf16.msra.mxu0 0
    %466 = vmatprep.subr.bf16.mxu0 0
    %467 = vmatpush1.bf16.msra.mxu0 0
    %468 = vmatprep.mubr.bf16.mxu0 0
    %469 = vmatmul.mubr.bf16.gmra.mrb[0].mxu0 %v326
    %v470 = vpop.f32.mrb[0].mxu0
    %v471 = vadd.f32 %v349, %v470
    %v472 = vpop.f32.mrb[0].mxu0
    %v473 = vadd.f32 %v353, %v472
    %v474 = vpop.f32.mrb[0].mxu0
    %v475 = vadd.f32 %v349, %v474
    %v476 = vpop.f32.mrb[0].mxu0
    %v477 = vadd.f32 %v353, %v476
    %478 = vmatprep.mubr.bf16.mxu0 0
    %479 = vmatmul.mubr.bf16.gmra.mrb[0].mxu0 %v327
    %v480 = vpop.f32.mrb[0].mxu0
    %v481 = vadd.f32 %v349, %v480
    %v482 = vpop.f32.mrb[0].mxu0
    %v483 = vadd.f32 %v353, %v482
    %v484 = vpop.f32.mrb[0].mxu0
    %v485 = vadd.f32 %v349, %v484
    %v486 = vpop.f32.mrb[0].mxu0
    %v487 = vadd.f32 %v353, %v486
    %488 = vdwg.mxu0
    %v489 = vmul.f32 %v473, 0.5
    %v490 = vmul.f32 %v477, 0.5
    %v491 = vmul.f32 %v483, 0.5
    %v492 = vmul.f32 %v487, 0.5
    %v493 = vmul.f32 %v489, 1.442695
    %v494 = vpow.pop %v493
    %v495 = vmul.f32 %v490, 1.442695
    %v496 = vpow.pop %v495
    %v497 = vmul.f32 %v491, 1.442695
    %v498 = vpow.pop %v497
    %v499 = vmul.f32 %v492, 1.442695
    %v500 = vpow.pop %v499
    %v501 = vmul.f32 %v126, %v494
    %v502 = vmul.f32 %v127, %v496
    %v503 = vmul.f32 %v128, %v498
    %v504 = vmul.f32 %v129, %v500
    %v505 = vadd.f32 %v471, %v501
    %v506 = vadd.f32 %v475, %v502
    %v507 = vadd.f32 %v481, %v503
    %v508 = vadd.f32 %v485, %v504
    %v509 = vpack.c.bf16 %v506, %v505
    %v510 = vpack.c.bf16 %v508, %v507
    %v511 = vld [vmem:[#allocation10] sm:$0xff]
    %v512 = vld [vmem:[#allocation10 + $0x8] sm:$0xff]
    %v513 = vld [vmem:[#allocation10 + $0x10] sm:$0xff]
    %v514 = vld [vmem:[#allocation10 + $0x18] sm:$0xff]
    %v515 = vld [vmem:[%s6] sm:$0x3]
    %v517 = vlaneseq
    %v518 = vshrl.u32 %v517, 7
    %v519 = vsub.s32 0, %v518
    %v520 = vrot.slane %v515, %v519
    %v521 = vlaneseq
    %v522 = vshrl.u32 %v521, 7
    %v523 = vsub.s32 1, %v522
    %v524 = vrot.slane %v515, %v523
    %v531 = vunpack.c.l.b16 %v511
    %v532 = vunpack.c.h.b16 %v511
    %v533 = vunpack.c.l.b16 %v512
    %v534 = vunpack.c.h.b16 %v512
    %v535 = vunpack.c.l.b16 %v513
    %v536 = vunpack.c.h.b16 %v513
    %v537 = vunpack.c.l.b16 %v514
    %v538 = vunpack.c.h.b16 %v514
    %v539 = vpack.c.b16 %v533, %v531
    %v540 = vpack.c.b16 %v534, %v532
    %v541 = vpack.c.b16 %v537, %v535
    %v542 = vpack.c.b16 %v538, %v536
    %vm547 = vcmask 261120
    %v549 = vsel %vm547, %v509, 0
    %v552 = vsel %vm547, %v510, 0
    %554 = vmatprep.subr.bf16.mxu0 %v540
    %555 = vmatpush1.bf16.msra.mxu0 %v539
    %556 = vmatprep.subr.bf16.mxu0 %v542
    %557 = vmatpush1.bf16.msra.mxu0 %v541
    %558 = vmatprep.subr.bf16.mxu0 0
    %559 = vmatpush1.bf16.msra.mxu0 0
    %560 = vmatprep.subr.bf16.mxu0 0
    %561 = vmatpush1.bf16.msra.mxu0 0
    %562 = vmatprep.subr.bf16.mxu0 0
    %563 = vmatpush1.bf16.msra.mxu0 0
    %564 = vmatprep.subr.bf16.mxu0 0
    %565 = vmatpush1.bf16.msra.mxu0 0
    %566 = vmatprep.subr.bf16.mxu0 0
    %567 = vmatpush1.bf16.msra.mxu0 0
    %568 = vmatprep.subr.bf16.mxu0 0
    %569 = vmatpush1.bf16.msra.mxu0 0
    %570 = vmatprep.subr.bf16.mxu0 0
    %571 = vmatpush1.bf16.msra.mxu0 0
    %572 = vmatprep.subr.bf16.mxu0 0
    %573 = vmatpush1.bf16.msra.mxu0 0
    %574 = vmatprep.subr.bf16.mxu0 0
    %575 = vmatpush1.bf16.msra.mxu0 0
    %576 = vmatprep.subr.bf16.mxu0 0
    %577 = vmatpush1.bf16.msra.mxu0 0
    %578 = vmatprep.subr.bf16.mxu0 0
    %579 = vmatpush1.bf16.msra.mxu0 0
    %580 = vmatprep.subr.bf16.mxu0 0
    %581 = vmatpush1.bf16.msra.mxu0 0
    %582 = vmatprep.subr.bf16.mxu0 0
    %583 = vmatpush1.bf16.msra.mxu0 0
    %584 = vmatprep.subr.bf16.mxu0 0
    %585 = vmatpush1.bf16.msra.mxu0 0
    %586 = vmatprep.mubr.bf16.mxu0 0
    %587 = vmatmul.mubr.bf16.gmra.mrb[0].mxu0 %v549
    %v588 = vpop.f32.mrb[0].mxu0
    %v589 = vadd.f32 %v520, %v588
    %v590 = vpop.f32.mrb[0].mxu0
    %v591 = vadd.f32 %v524, %v590
    %v592 = vpop.f32.mrb[0].mxu0
    %v593 = vadd.f32 %v520, %v592
    %v594 = vpop.f32.mrb[0].mxu0
    %v595 = vadd.f32 %v524, %v594
    %596 = vmatprep.mubr.bf16.mxu0 0
    %597 = vmatmul.mubr.bf16.gmra.mrb[0].mxu0 %v552
    %v598 = vpop.f32.mrb[0].mxu0
    %v599 = vadd.f32 %v520, %v598
    %v600 = vpop.f32.mrb[0].mxu0
    %v601 = vadd.f32 %v524, %v600
    %v602 = vpop.f32.mrb[0].mxu0
    %v603 = vadd.f32 %v520, %v602
    %v604 = vpop.f32.mrb[0].mxu0
    %v605 = vadd.f32 %v524, %v604
    %606 = vdwg.mxu0
    %v607 = vmax.f32 %v589, 0.0
    %v608 = vmax.f32 %v593, 0.0
    %v609 = vmax.f32 %v599, 0.0
    %v610 = vmax.f32 %v603, 0.0
    %v611 = vtanh.pop %v591
    %v612 = vtanh.pop %v595
    %v613 = vtanh.pop %v601
    %v614 = vtanh.pop %v605
    %v615 = vpack.c.bf16 %v608, %v607
    %v616 = vpack.c.bf16 %v612, %v611
    %v617 = vpack.c.bf16 %v610, %v609
    %v618 = vpack.c.bf16 %v614, %v613
    %v619 = vld [vmem:[#allocation11] sm:$0xff]
    %v620 = vld [vmem:[#allocation11 + $0x8] sm:$0xf]
    %v621 = vld [vmem:[#allocation11 + $0xc] sm:$0xff]
    %v622 = vld [vmem:[#allocation11 + $0x14] sm:$0xf]
    %v623 = vld [vmem:[#allocation11 + $0x18] sm:$0xff]
    %v624 = vld [vmem:[#allocation11 + $0x20] sm:$0xf]
    %v625 = vld [vmem:[#allocation11 + $0x24] sm:$0xff]
    %v626 = vld [vmem:[#allocation11 + $0x2c] sm:$0xf]
    %v627 = vld [vmem:[#allocation11 + $0x30] sm:$0xff]
    %v628 = vld [vmem:[#allocation11 + $0x38] sm:$0xf]
    %v629 = vld [vmem:[#allocation11 + $0x3c] sm:$0xff]
    %v630 = vld [vmem:[#allocation11 + $0x44] sm:$0xf]
    %v631 = vld [vmem:[#allocation11 + $0x48] sm:$0xff]
    %v632 = vld [vmem:[#allocation11 + $0x50] sm:$0xf]
    %v633 = vld [vmem:[#allocation11 + $0x54] sm:$0xff]
    %v634 = vld [vmem:[#allocation11 + $0x5c] sm:$0xf]
    %v635 = vld [vmem:[#allocation11 + $0x60] sm:$0xff]
    %v636 = vld [vmem:[#allocation11 + $0x68] sm:$0xf]
    %v637 = vld [vmem:[#allocation11 + $0x6c] sm:$0xff]
    %v638 = vld [vmem:[#allocation11 + $0x74] sm:$0xf]
    %v639 = vld [vmem:[#allocation11 + $0x78] sm:$0xff]
    %v640 = vld [vmem:[#allocation11 + $0x80] sm:$0xf]
    %v641 = vld [vmem:[#allocation11 + $0x84] sm:$0xff]
    %v642 = vld [vmem:[#allocation11 + $0x8c] sm:$0xf]
    %v643 = vld [vmem:[#allocation11 + $0x90] sm:$0xff]
    %v644 = vld [vmem:[#allocation11 + $0x98] sm:$0xf]
    %v645 = vld [vmem:[#allocation11 + $0x9c] sm:$0xff]
    %v646 = vld [vmem:[#allocation11 + $0xa4] sm:$0xf]
    %v647 = vld [vmem:[#allocation11 + $0xa8] sm:$0xff]
    %v648 = vld [vmem:[#allocation11 + $0xb0] sm:$0xf]
    %v649 = vld [vmem:[#allocation11 + $0xb4] sm:$0xff]
    %v650 = vld [vmem:[#allocation11 + $0xbc] sm:$0xf]
    %v651 = vld [vmem:[#allocation11 + $0xc0] sm:$0xff]
    %v652 = vld [vmem:[#allocation11 + $0xc8] sm:$0xf]
    %v653 = vld [vmem:[#allocation11 + $0xcc] sm:$0xff]
    %v654 = vld [vmem:[#allocation11 + $0xd4] sm:$0xf]
    %v655 = vld [vmem:[#allocation11 + $0xd8] sm:$0xff]
    %v656 = vld [vmem:[#allocation11 + $0xe0] sm:$0xf]
    %v657 = vld [vmem:[#allocation11 + $0xe4] sm:$0xff]
    %v658 = vld [vmem:[#allocation11 + $0xec] sm:$0xf]
    %v659 = vld [vmem:[#allocation11 + $0xf0] sm:$0xff]
    %v660 = vld [vmem:[#allocation11 + $0xf8] sm:$0xf]
    %v661 = vld [vmem:[#allocation11 + $0xfc] sm:$0xff]
    %v662 = vld [vmem:[#allocation11 + $0x104] sm:$0xf]
    %v663 = vld [vmem:[#allocation11 + $0x108] sm:$0xff]
    %v664 = vld [vmem:[#allocation11 + $0x110] sm:$0xf]
    %v665 = vld [vmem:[#allocation11 + $0x114] sm:$0xff]
    %v666 = vld [vmem:[#allocation11 + $0x11c] sm:$0xf]
    %v667 = vld [vmem:[#allocation11 + $0x120] sm:$0xff]
    %v668 = vld [vmem:[#allocation11 + $0x128] sm:$0xf]
    %v669 = vld [vmem:[#allocation11 + $0x12c] sm:$0xff]
    %v670 = vld [vmem:[#allocation11 + $0x134] sm:$0xf]
    %v671 = vld [vmem:[#allocation11 + $0x138] sm:$0xff]
    %v672 = vld [vmem:[#allocation11 + $0x140] sm:$0xf]
    %v673 = vld [vmem:[#allocation11 + $0x144] sm:$0xff]
    %v674 = vld [vmem:[#allocation11 + $0x14c] sm:$0xf]
    %v675 = vld [vmem:[#allocation11 + $0x150] sm:$0xff]
    %v676 = vld [vmem:[#allocation11 + $0x158] sm:$0xf]
    %v677 = vld [vmem:[#allocation11 + $0x15c] sm:$0xff]
    %v678 = vld [vmem:[#allocation11 + $0x164] sm:$0xf]
    %v679 = vld [vmem:[#allocation11 + $0x168] sm:$0xff]
    %v680 = vld [vmem:[#allocation11 + $0x170] sm:$0xf]
    %v681 = vld [vmem:[#allocation11 + $0x174] sm:$0xff]
    %v682 = vld [vmem:[#allocation11 + $0x17c] sm:$0xf]
    %v683 = vld [vmem:[%s8] sm:$0x7]
    %v685 = vlaneseq
    %v686 = vshrl.u32 %v685, 7
    %v687 = vsub.s32 0, %v686
    %v688 = vrot.slane %v683, %v687
    %v689 = vlaneseq
    %v690 = vshrl.u32 %v689, 7
    %v691 = vsub.s32 1, %v690
    %v692 = vrot.slane %v683, %v691
    %v693 = vlaneseq
    %v694 = vshrl.u32 %v693, 7
    %v695 = vsub.s32 2, %v694
    %v696 = vrot.slane %v683, %v695
    %v764 = vunpack.c.l.b16 %v619
    %v765 = vunpack.c.h.b16 %v619
    %v766 = vunpack.c.l.b16 %v620
    %v767 = vunpack.c.l.b16 %v621
    %v768 = vunpack.c.h.b16 %v621
    %v769 = vunpack.c.l.b16 %v622
    %v770 = vunpack.c.l.b16 %v623
    %v771 = vunpack.c.h.b16 %v623
    %v772 = vunpack.c.l.b16 %v624
    %v773 = vunpack.c.l.b16 %v625
    %v774 = vunpack.c.h.b16 %v625
    %v775 = vunpack.c.l.b16 %v626
    %v776 = vunpack.c.l.b16 %v627
    %v777 = vunpack.c.h.b16 %v627
    %v778 = vunpack.c.l.b16 %v628
    %v779 = vunpack.c.l.b16 %v629
    %v780 = vunpack.c.h.b16 %v629
    %v781 = vunpack.c.l.b16 %v630
    %v782 = vunpack.c.l.b16 %v631
    %v783 = vunpack.c.h.b16 %v631
    %v784 = vunpack.c.l.b16 %v632
    %v785 = vunpack.c.l.b16 %v633
    %v786 = vunpack.c.h.b16 %v633
    %v787 = vunpack.c.l.b16 %v634
    %v788 = vunpack.c.l.b16 %v635
    %v789 = vunpack.c.h.b16 %v635
    %v790 = vunpack.c.l.b16 %v636
    %v791 = vunpack.c.l.b16 %v637
    %v792 = vunpack.c.h.b16 %v637
    %v793 = vunpack.c.l.b16 %v638
    %v794 = vunpack.c.l.b16 %v639
    %v795 = vunpack.c.h.b16 %v639
    %v796 = vunpack.c.l.b16 %v640
    %v797 = vunpack.c.l.b16 %v641
    %v798 = vunpack.c.h.b16 %v641
    %v799 = vunpack.c.l.b16 %v642
    %v800 = vunpack.c.l.b16 %v643
    %v801 = vunpack.c.h.b16 %v643
    %v802 = vunpack.c.l.b16 %v644
    %v803 = vunpack.c.l.b16 %v645
    %v804 = vunpack.c.h.b16 %v645
    %v805 = vunpack.c.l.b16 %v646
    %v806 = vunpack.c.l.b16 %v647
    %v807 = vunpack.c.h.b16 %v647
    %v808 = vunpack.c.l.b16 %v648
    %v809 = vunpack.c.l.b16 %v649
    %v810 = vunpack.c.h.b16 %v649
    %v811 = vunpack.c.l.b16 %v650
    %v812 = vunpack.c.l.b16 %v651
    %v813 = vunpack.c.h.b16 %v651
    %v814 = vunpack.c.l.b16 %v652
    %v815 = vunpack.c.l.b16 %v653
    %v816 = vunpack.c.h.b16 %v653
    %v817 = vunpack.c.l.b16 %v654
    %v818 = vunpack.c.l.b16 %v655
    %v819 = vunpack.c.h.b16 %v655
    %v820 = vunpack.c.l.b16 %v656
    %v821 = vunpack.c.l.b16 %v657
    %v822 = vunpack.c.h.b16 %v657
    %v823 = vunpack.c.l.b16 %v658
    %v824 = vunpack.c.l.b16 %v659
    %v825 = vunpack.c.h.b16 %v659
    %v826 = vunpack.c.l.b16 %v660
    %v827 = vunpack.c.l.b16 %v661
    %v828 = vunpack.c.h.b16 %v661
    %v829 = vunpack.c.l.b16 %v662
    %v830 = vunpack.c.l.b16 %v663
    %v831 = vunpack.c.h.b16 %v663
    %v832 = vunpack.c.l.b16 %v664
    %v833 = vunpack.c.l.b16 %v665
    %v834 = vunpack.c.h.b16 %v665
    %v835 = vunpack.c.l.b16 %v666
    %v836 = vunpack.c.l.b16 %v667
    %v837 = vunpack.c.h.b16 %v667
    %v838 = vunpack.c.l.b16 %v668
    %v839 = vunpack.c.l.b16 %v669
    %v840 = vunpack.c.h.b16 %v669
    %v841 = vunpack.c.l.b16 %v670
    %v842 = vunpack.c.l.b16 %v671
    %v843 = vunpack.c.h.b16 %v671
    %v844 = vunpack.c.l.b16 %v672
    %v845 = vunpack.c.l.b16 %v673
    %v846 = vunpack.c.h.b16 %v673
    %v847 = vunpack.c.l.b16 %v674
    %v848 = vunpack.c.l.b16 %v675
    %v849 = vunpack.c.h.b16 %v675
    %v850 = vunpack.c.l.b16 %v676
    %v851 = vunpack.c.l.b16 %v677
    %v852 = vunpack.c.h.b16 %v677
    %v853 = vunpack.c.l.b16 %v678
    %v854 = vunpack.c.l.b16 %v679
    %v855 = vunpack.c.h.b16 %v679
    %v856 = vunpack.c.l.b16 %v680
    %v857 = vunpack.c.l.b16 %v681
    %v858 = vunpack.c.h.b16 %v681
    %v859 = vunpack.c.l.b16 %v682
    %v860 = vpack.c.b16 %v767, %v764
    %v861 = vpack.c.b16 %v768, %v765
    %v862 = vpack.c.b16 %v769, %v766
    %v863 = vpack.c.b16 %v773, %v770
    %v864 = vpack.c.b16 %v774, %v771
    %v865 = vpack.c.b16 %v775, %v772
    %v866 = vpack.c.b16 %v779, %v776
    %v867 = vpack.c.b16 %v780, %v777
    %v868 = vpack.c.b16 %v781, %v778
    %v869 = vpack.c.b16 %v785, %v782
    %v870 = vpack.c.b16 %v786, %v783
    %v871 = vpack.c.b16 %v787, %v784
    %v872 = vpack.c.b16 %v791, %v788
    %v873 = vpack.c.b16 %v792, %v789
    %v874 = vpack.c.b16 %v793, %v790
    %v875 = vpack.c.b16 %v797, %v794
    %v876 = vpack.c.b16 %v798, %v795
    %v877 = vpack.c.b16 %v799, %v796
    %v878 = vpack.c.b16 %v803, %v800
    %v879 = vpack.c.b16 %v804, %v801
    %v880 = vpack.c.b16 %v805, %v802
    %v881 = vpack.c.b16 %v809, %v806
    %v882 = vpack.c.b16 %v810, %v807
    %v883 = vpack.c.b16 %v811, %v808
    %v884 = vpack.c.b16 %v815, %v812
    %v885 = vpack.c.b16 %v816, %v813
    %v886 = vpack.c.b16 %v817, %v814
    %v887 = vpack.c.b16 %v821, %v818
    %v888 = vpack.c.b16 %v822, %v819
    %v889 = vpack.c.b16 %v823, %v820
    %v890 = vpack.c.b16 %v827, %v824
    %v891 = vpack.c.b16 %v828, %v825
    %v892 = vpack.c.b16 %v829, %v826
    %v893 = vpack.c.b16 %v833, %v830
    %v894 = vpack.c.b16 %v834, %v831
    %v895 = vpack.c.b16 %v835, %v832
    %v896 = vpack.c.b16 %v839, %v836
    %v897 = vpack.c.b16 %v840, %v837
    %v898 = vpack.c.b16 %v841, %v838
    %v899 = vpack.c.b16 %v845, %v842
    %v900 = vpack.c.b16 %v846, %v843
    %v901 = vpack.c.b16 %v847, %v844
    %v902 = vpack.c.b16 %v851, %v848
    %v903 = vpack.c.b16 %v852, %v849
    %v904 = vpack.c.b16 %v853, %v850
    %v905 = vpack.c.b16 %v857, %v854
    %v906 = vpack.c.b16 %v858, %v855
    %v907 = vpack.c.b16 %v859, %v856
    %956 = vmatprep.subr.bf16.mxu0 %v861
    %957 = vmatpush1.bf16.msra.mxu0 %v860
    %958 = vmatprep.subr.bf16.mxu0 %v864
    %959 = vmatpush1.bf16.msra.mxu0 %v863
    %960 = vmatprep.subr.bf16.mxu0 %v867
    %961 = vmatpush1.bf16.msra.mxu0 %v866
    %962 = vmatprep.subr.bf16.mxu0 %v870
    %963 = vmatpush1.bf16.msra.mxu0 %v869
    %964 = vmatprep.subr.bf16.mxu0 %v873
    %965 = vmatpush1.bf16.msra.mxu0 %v872
    %966 = vmatprep.subr.bf16.mxu0 %v876
    %967 = vmatpush1.bf16.msra.mxu0 %v875
    %968 = vmatprep.subr.bf16.mxu0 %v879
    %969 = vmatpush1.bf16.msra.mxu0 %v878
    %970 = vmatprep.subr.bf16.mxu0 %v882
    %971 = vmatpush1.bf16.msra.mxu0 %v881
    %972 = vmatprep.subr.bf16.mxu0 %v885
    %973 = vmatpush1.bf16.msra.mxu0 %v884
    %974 = vmatprep.subr.bf16.mxu0 %v888
    %975 = vmatpush1.bf16.msra.mxu0 %v887
    %976 = vmatprep.subr.bf16.mxu0 %v891
    %977 = vmatpush1.bf16.msra.mxu0 %v890
    %978 = vmatprep.subr.bf16.mxu0 %v894
    %979 = vmatpush1.bf16.msra.mxu0 %v893
    %980 = vmatprep.subr.bf16.mxu0 %v897
    %981 = vmatpush1.bf16.msra.mxu0 %v896
    %982 = vmatprep.subr.bf16.mxu0 %v900
    %983 = vmatpush1.bf16.msra.mxu0 %v899
    %984 = vmatprep.subr.bf16.mxu0 %v903
    %985 = vmatpush1.bf16.msra.mxu0 %v902
    %986 = vmatprep.subr.bf16.mxu0 %v906
    %987 = vmatpush1.bf16.msra.mxu0 %v905
    %988 = vmatprep.mubr.bf16.mxu0 %v616
    %989 = vmatmul.mubr.bf16.gmra.mrb[0].mxu0 %v615
    %v990 = vpop.f32.mrb[0].mxu0
    %v991 = vadd.f32 %v688, %v990
    %v992 = vpop.f32.mrb[0].mxu0
    %v993 = vadd.f32 %v692, %v992
    %v994 = vpop.f32.mrb[0].mxu0
    %v995 = vadd.f32 %v688, %v994
    %v996 = vpop.f32.mrb[0].mxu0
    %v997 = vadd.f32 %v692, %v996
    %998 = vmatprep.mubr.bf16.mxu0 %v618
    %999 = vmatmul.mubr.bf16.gmra.mrb[0].mxu0 %v617
    %v1000 = vpop.f32.mrb[0].mxu0
    %v1001 = vadd.f32 %v688, %v1000
    %v1002 = vpop.f32.mrb[0].mxu0
    %v1003 = vadd.f32 %v692, %v1002
    %v1004 = vpop.f32.mrb[0].mxu0
    %v1005 = vadd.f32 %v688, %v1004
    %v1006 = vpop.f32.mrb[0].mxu0
    %v1007 = vadd.f32 %v692, %v1006
    %1008 = vdwg.mxu0
    %1009 = vmatprep.subr.bf16.mxu0 0
    %1010 = vmatpush1.bf16.msra.mxu0 %v862
    %1011 = vmatprep.subr.bf16.mxu0 0
    %1012 = vmatpush1.bf16.msra.mxu0 %v865
    %1013 = vmatprep.subr.bf16.mxu0 0
    %1014 = vmatpush1.bf16.msra.mxu0 %v868
    %1015 = vmatprep.subr.bf16.mxu0 0
    %1016 = vmatpush1.bf16.msra.mxu0 %v871
    %1017 = vmatprep.subr.bf16.mxu0 0
    %1018 = vmatpush1.bf16.msra.mxu0 %v874
    %1019 = vmatprep.subr.bf16.mxu0 0
    %1020 = vmatpush1.bf16.msra.mxu0 %v877
    %1021 = vmatprep.subr.bf16.mxu0 0
    %1022 = vmatpush1.bf16.msra.mxu0 %v880
    %1023 = vmatprep.subr.bf16.mxu0 0
    %1024 = vmatpush1.bf16.msra.mxu0 %v883
    %1025 = vmatprep.subr.bf16.mxu0 0
    %1026 = vmatpush1.bf16.msra.mxu0 %v886
    %1027 = vmatprep.subr.bf16.mxu0 0
    %1028 = vmatpush1.bf16.msra.mxu0 %v889
    %1029 = vmatprep.subr.bf16.mxu0 0
    %1030 = vmatpush1.bf16.msra.mxu0 %v892
    %1031 = vmatprep.subr.bf16.mxu0 0
    %1032 = vmatpush1.bf16.msra.mxu0 %v895
    %1033 = vmatprep.subr.bf16.mxu0 0
    %1034 = vmatpush1.bf16.msra.mxu0 %v898
    %1035 = vmatprep.subr.bf16.mxu0 0
    %1036 = vmatpush1.bf16.msra.mxu0 %v901
    %1037 = vmatprep.subr.bf16.mxu0 0
    %1038 = vmatpush1.bf16.msra.mxu0 %v904
    %1039 = vmatprep.subr.bf16.mxu0 0
    %1040 = vmatpush1.bf16.msra.mxu0 %v907
    %1041 = vmatprep.mubr.bf16.mxu0 %v616
    %1042 = vmatmul.mubr.bf16.gmra.mrb[0].mxu0 %v615
    %v1043 = vpop.f32.mrb[0].mxu0
    %v1044 = vadd.f32 %v696, %v1043
    %v1045 = vpop.f32.mrb[0].mxu0
    %v1046 = vpop.f32.mrb[0].mxu0
    %v1047 = vadd.f32 %v696, %v1046
    %v1048 = vpop.f32.mrb[0].mxu0
    %1049 = vmatprep.mubr.bf16.mxu0 %v618
    %1050 = vmatmul.mubr.bf16.gmra.mrb[0].mxu0 %v617
    %v1051 = vpop.f32.mrb[0].mxu0
    %v1052 = vadd.f32 %v696, %v1051
    %v1053 = vpop.f32.mrb[0].mxu0
    %v1054 = vpop.f32.mrb[0].mxu0
    %v1055 = vadd.f32 %v696, %v1054
    %v1056 = vpop.f32.mrb[0].mxu0
    %1057 = vdwg.mxu0
    %v1058 = vxor.u32 %v991, 2147483648
    %v1059 = vxor.u32 %v993, 2147483648
    %v1060 = vxor.u32 %v995, 2147483648
    %v1061 = vxor.u32 %v997, 2147483648
    %v1062 = vxor.u32 %v1001, 2147483648
    %v1063 = vxor.u32 %v1003, 2147483648
    %v1064 = vxor.u32 %v1005, 2147483648
    %v1065 = vxor.u32 %v1007, 2147483648
    %v1066 = vmul.f32 %v1058, 1.442695
    %v1067 = vpow.pop %v1066
    %v1068 = vmul.f32 %v1059, 1.442695
    %v1069 = vpow.pop %v1068
    %v1070 = vmul.f32 %v1060, 1.442695
    %v1071 = vpow.pop %v1070
    %v1072 = vmul.f32 %v1061, 1.442695
    %v1073 = vpow.pop %v1072
    %v1074 = vmul.f32 %v1062, 1.442695
    %v1075 = vpow.pop %v1074
    %v1076 = vmul.f32 %v1063, 1.442695
    %v1077 = vpow.pop %v1076
    %v1078 = vmul.f32 %v1064, 1.442695
    %v1079 = vpow.pop %v1078
    %v1080 = vmul.f32 %v1065, 1.442695
    %v1081 = vpow.pop %v1080
    %v1082 = vadd.f32 %v1067, 1.0
    %v1083 = vadd.f32 %v1069, 1.0
    %v1084 = vadd.f32 %v1071, 1.0
    %v1085 = vadd.f32 %v1073, 1.0
    %v1086 = vadd.f32 %v1075, 1.0
    %v1087 = vadd.f32 %v1077, 1.0
    %v1088 = vadd.f32 %v1079, 1.0
    %v1089 = vadd.f32 %v1081, 1.0
    %v1090 = vrcp.pop %v1082
    %v1091 = vmul.f32 1.0, %v1090
    %v1092 = vrcp.pop %v1083
    %v1093 = vmul.f32 1.0, %v1092
    %v1094 = vrcp.pop %v1084
    %v1095 = vmul.f32 1.0, %v1094
    %v1096 = vrcp.pop %v1085
    %v1097 = vmul.f32 1.0, %v1096
    %v1098 = vrcp.pop %v1086
    %v1099 = vmul.f32 1.0, %v1098
    %v1100 = vrcp.pop %v1087
    %v1101 = vmul.f32 1.0, %v1100
    %v1102 = vrcp.pop %v1088
    %v1103 = vmul.f32 1.0, %v1102
    %v1104 = vrcp.pop %v1089
    %v1105 = vmul.f32 1.0, %v1104
    %1106 = vst [vmem:[#allocation14] sm:$0xff] %v1091
    %1107 = vst [vmem:[#allocation14 + $0x8] sm:$0xff] %v1093
    %1108 = vst [vmem:[#allocation14 + $0x10] sm:$0xff] %v1095
    %1109 = vst [vmem:[#allocation14 + $0x18] sm:$0xff] %v1097
    %1110 = vst [vmem:[#allocation14 + $0x20] sm:$0xff] %v1099
    %1111 = vst [vmem:[#allocation14 + $0x28] sm:$0xff] %v1101
    %1112 = vst [vmem:[#allocation14 + $0x30] sm:$0xff] %v1103
    %1113 = vst [vmem:[#allocation14 + $0x38] sm:$0xff] %v1105
    %1118 = vrot.lane.b32.xlu0 %v473, 32
    %v1119 = vpop.permute.xlu0 %1118
    %1120 = vrot.lane.b32.xlu0 %v477, 32
    %v1121 = vpop.permute.xlu0 %1120
    %1122 = vrot.lane.b32.xlu0 %v483, 32
    %v1123 = vpop.permute.xlu0 %1122
    %1124 = vrot.lane.b32.xlu0 %v487, 32
    %v1125 = vpop.permute.xlu0 %1124
    %1134 = vrot.lane.b32.xlu0 %v505, 64
    %v1135 = vpop.permute.xlu0 %1134
    %1136 = vrot.lane.b32.xlu0 %v506, 64
    %v1137 = vpop.permute.xlu0 %1136
    %1138 = vrot.lane.b32.xlu0 %v507, 64
    %v1139 = vpop.permute.xlu0 %1138
    %1140 = vrot.lane.b32.xlu0 %v508, 64
    %v1141 = vpop.permute.xlu0 %1140
    %1150 = vrot.lane.b32.xlu0 %v1044, 96
    %v1151 = vpop.permute.xlu0 %1150
    %1152 = vrot.lane.b32.xlu0 %v1047, 96
    %v1153 = vpop.permute.xlu0 %1152
    %1154 = vrot.lane.b32.xlu0 %v1052, 96
    %v1155 = vpop.permute.xlu0 %1154
    %1156 = vrot.lane.b32.xlu0 %v1055, 96
    %v1157 = vpop.permute.xlu0 %1156
    %v1162 = vsel %vm547, %v471, %v1119
    %v1163 = vsel %vm547, %v475, %v1121
    %v1164 = vsel %vm547, %v481, %v1123
    %v1165 = vsel %vm547, %v485, %v1125
    %vm1166 = vcmask 523264
    %v1167 = vsel %vm1166, %v1162, %v1135
    %v1168 = vsel %vm1166, %v1163, %v1137
    %v1169 = vsel %vm1166, %v1164, %v1139
    %v1170 = vsel %vm1166, %v1165, %v1141
    %vm1171 = vcmask 785408
    %v1172 = vsel %vm1171, %v1167, %v1151
    %v1173 = vsel %vm1171, %v1168, %v1153
    %v1174 = vsel %vm1171, %v1169, %v1155
    %v1175 = vsel %vm1171, %v1170, %v1157
    %vm1176 = vcmask 867328
    %v1177 = vsel %vm1176, %v1172, 0.0
    %v1178 = vsel %vm1176, %v1173, 0.0
    %v1179 = vsel %vm1176, %v1174, 0.0
    %v1180 = vsel %vm1176, %v1175, 0.0
    %1181 = vst [vmem:[#allocation16] sm:$0xff] %v1177
    %1182 = vst [vmem:[#allocation16 + $0x8] sm:$0xff] %v1178
    %1183 = vst [vmem:[#allocation16 + $0x10] sm:$0xff] %v1179
    %1184 = vst [vmem:[#allocation16 + $0x18] sm:$0xff] %v1180
    // Predicated region
    $region62: #{tpu_custom_call.1} parent=1 // pred_check
      _
    $region63: #{tpu_custom_call.1} parent=1 // pred_check_branch
      %1186 = sbr.rel (0) target = $region65
    $region64: #{tpu_custom_call.1} parent=1 // pred_region
      %s1188 = ssub.s32 512, 512
      %1189 = vsyncadd [#allocation4], %s1188
      %s1190 = sshll.u32 [#allocation13], 4
      %s1191 = int_to_ptr.vmem [resolvable:$true] %s1190
      %1196 = dma.vmem_to_hbm [thread:$0]  %s1191, 512, %s9, [#allocation4], 128, 128, 8
    $region65: #{tpu_custom_call.1} parent=1 // pred_fallthru
      _
    // Predicated region
    $region66: #{tpu_custom_call.1} parent=1 // pred_check
      _
    $region67: #{tpu_custom_call.1} parent=1 // pred_check_branch
      %1198 = sbr.rel (0) target = $region69
    $region68: #{tpu_custom_call.1} parent=1 // pred_region
      %s1200 = ssub.s32 1024, 1024
      %1201 = vsyncadd [#allocation15], %s1200
      %s1202 = sshll.u32 [#allocation14], 4
      %s1203 = int_to_ptr.vmem [resolvable:$true] %s1202
      %1208 = dma.vmem_to_hbm [thread:$0]  %s1203, 1024, %s10, [#allocation15], 256, 256, 16
    $region69: #{tpu_custom_call.1} parent=1 // pred_fallthru
      _
    // Predicated region
    $region70: #{tpu_custom_call.1} parent=1 // pred_check
      _
    $region71: #{tpu_custom_call.1} parent=1 // pred_check_branch
      %1210 = sbr.rel (0) target = $region73
    $region72: #{tpu_custom_call.1} parent=1 // pred_region
      %s1212 = ssub.s32 512, 512
      %1213 = vsyncadd [#allocation15], %s1212
      %s1214 = sshll.u32 [#allocation16], 4
      %s1215 = int_to_ptr.vmem [resolvable:$true] %s1214
      %1220 = dma.vmem_to_hbm [thread:$0]  %s1215, 512, %s11, [#allocation15], 128, 128, 8
    $region73: #{tpu_custom_call.1} parent=1 // pred_fallthru
      _
    // Predicated region
    $region74: #{tpu_custom_call.1} parent=1 // pred_check
      _
    $region75: #{tpu_custom_call.1} parent=1 // pred_check_branch
      %1222 = sbr.rel (0) target = $region77
    $region76: #{tpu_custom_call.1} parent=1 // pred_region
      %1223 = dma.done [#allocation4], 512
    $region77: #{tpu_custom_call.1} parent=1 // pred_fallthru
      _
    // Predicated region
    $region78: #{tpu_custom_call.1} parent=1 // pred_check
      _
    $region79: #{tpu_custom_call.1} parent=1 // pred_check_branch
      %1225 = sbr.rel (0) target = $region81
    $region80: #{tpu_custom_call.1} parent=1 // pred_region
      %1226 = dma.done [#allocation15], 1024
    $region81: #{tpu_custom_call.1} parent=1 // pred_fallthru
      _
    // Predicated region
    $region82: #{tpu_custom_call.1} parent=1 // pred_check
      _
    $region83: #{tpu_custom_call.1} parent=1 // pred_check_branch
      %1228 = sbr.rel (0) target = $region85
    $region84: #{tpu_custom_call.1} parent=1 // pred_region
      %1229 = dma.done [#allocation15], 512
    $region85: #{tpu_custom_call.1} parent=1 // pred_fallthru
      _
    %1230 = vsyncpa [#allocation3], 1
    %1231 = vsyncpa [#allocation6], 1
    %1232 = vsyncpa [#allocation9], 1
    %1233 = vsyncpa [#allocation12], 1
    %1234 = vsyncpa [#allocation4], 1
    %1235 = vsyncpa [#allocation15], 1

</llo_original>
